<compile_context>
chip_gen: v7x
topology: tpu7x:2x2x1
jax: 0.10.0
libtpu: 0.0.40
codegen_flags: <defaults>
</compile_context>

<pallas_src>
import jax
import jax.numpy as jnp
from jax import lax
from jax.experimental import pallas as pl
from jax.experimental.pallas import tpu as pltpu


def _round_up(x, m):
    return ((x + m - 1) // m) * m


def _sublane_multiple(*dtypes):
    # Sub-32-bit dtypes pack along sublanes: bf16 packs 2 rows, int8 packs 4.
    m = 8
    for dt in dtypes:
        it = jnp.dtype(dt).itemsize
        if it < 4:
            m = max(m, 8 * (4 // it))
    return m


def _make_kernel(B, T, tb, tt, nt, need_row, need_col, approx):
    """Build the kernel specialized on static shape / edge-mask / nt==1 info."""

    def contrib(f_ref, t_ref, m_ref):
        f = f_ref[...].astype(jnp.float32)
        g = t_ref[...].astype(jnp.float32)
        m = m_ref[...].astype(jnp.float32)

        a = jnp.abs(f - g)
        b = jnp.abs(f) + jnp.abs(g)
        if approx:
            # EUP reciprocal frees the VALU slot (matters on v7x / bf16 inputs).
            r = a * pl.reciprocal(b, approx=True)
        else:
            r = a / b
        # divide_no_nan: zero NaN (0/0, Inf/Inf) and +Inf.  With exact division
        # +Inf is unreachable (|f-g| <= |f|+|g| so num/den overflow together);
        # with approx reciprocal a denormal denominator could flush to Inf, and
        # this guard covers that too.  |NaN| < inf and |Inf| < inf are False.
        r = jnp.where(jnp.abs(r) < jnp.float32(jnp.inf), r, jnp.float32(0.0))
        c = r * m

        if need_row or need_col:
            # Ragged edge tiles: zero contributions from rows/cols past B/T.
            valid = None
            if need_row:
                row = pl.program_id(0) * tb + lax.broadcasted_iota(
                    jnp.int32, (tb, tt), 0)
                valid = row < B
            if need_col:
                col = pl.program_id(1) * tt + lax.broadcasted_iota(
                    jnp.int32, (tb, tt), 1)
                cm = col < T
                valid = cm if valid is None else jnp.logical_and(valid, cm)
            c = jnp.where(valid, c, jnp.float32(0.0))
        return c

    if nt == 1:
        # Single time tile: skip the accumulator round-trip entirely.
        def kernel(f_ref, t_ref, m_ref, o_ref):
            o_ref[0, 0] = jnp.sum(contrib(f_ref, t_ref, m_ref))

        return kernel, []

    def kernel(f_ref, t_ref, m_ref, o_ref, acc_ref):
        j = pl.program_id(1)

        @pl.when(j == 0)
        def _():
            acc_ref[...] = jnp.zeros_like(acc_ref)

        # Pure VPU per-step accumulation; single cross-lane reduce at finalize.
        acc_ref[...] += contrib(f_ref, t_ref, m_ref)

        @pl.when(j == nt - 1)
        def _():
            o_ref[0, 0] = jnp.sum(acc_ref[...])

    return kernel, [pltpu.VMEM((tb, tt), jnp.float32)]


def smape_loss(insample, freq, forecast, target, mask, *,
               tile_t=2048, block_bytes=2 << 20, approx=True):
    """Pallas sMAPE loss.  insample / freq are unused (matches the PyTorch module)."""
    del insample, freq
    B, T = forecast.shape
    n = B * T

    sub = _sublane_multiple(forecast.dtype, target.dtype, mask.dtype)
    itemsize = max(jnp.dtype(x.dtype).itemsize for x in (forecast, target, mask))

    Bp = _round_up(B, sub)
    Tp = _round_up(T, 128)

    # Time tile: full (128-aligned) T when it fits, else the cap (multiple of 128).
    tt = min(_round_up(tile_t, 128), Tp)
    # Batch tile by byte budget (~block_bytes per input block, largest dtype).
    tb = max(sub, (block_bytes // (itemsize * tt)) // sub * sub)
    tb = min(tb, Bp)
    # Keep >= 2 batch tiles when possible so v7x's two TensorCores both get work.
    if Bp >= 2 * sub:
        tb = min(tb, _round_up((Bp + 1) // 2, sub))

    nb = pl.cdiv(B, tb)
    nt = pl.cdiv(T, tt)
    need_row = (B % tb) != 0
    need_col = (T % tt) != 0

    kernel, scratch = _make_kernel(B, T, tb, tt, nt, need_row, need_col, approx)

    in_spec = pl.BlockSpec((tb, tt), lambda i, j: (i, j))

    in_bytes = sum(x.size * jnp.dtype(x.dtype).itemsize
                   for x in (forecast, target, mask))
    cost = pl.CostEstimate(flops=10 * n,
                           transcendentals=(n if approx else 0),
                           bytes_accessed=in_bytes + nb * 4)

    partials = pl.pallas_call(
        kernel,
        out_shape=jax.ShapeDtypeStruct((nb, 1), jnp.float32),
        grid_spec=pltpu.PrefetchScalarGridSpec(
            num_scalar_prefetch=0,
            grid=(nb, nt),
            in_specs=[in_spec, in_spec, in_spec],
            out_specs=pl.BlockSpec((1, 1), lambda i, j: (i, 0),
                                   memory_space=pltpu.MemorySpace.SMEM),
            scratch_shapes=scratch,
        ),
        compiler_params=pltpu.CompilerParams(
            dimension_semantics=("parallel", "arbitrary"),
            vmem_limit_bytes=32 << 20,
        ),
        cost_estimate=cost,
    )(forecast, target, mask)

    return jnp.sum(partials) * jnp.float32(200.0 / n)


def _smape_ref(forecast, target, mask):
    f = forecast.astype(jnp.float32)
    g = target.astype(jnp.float32)
    r = jnp.abs(f - g) / (jnp.abs(f) + jnp.abs(g))
    r = jnp.where(jnp.isnan(r), 0.0, r)
    r = jnp.where(r == jnp.inf, 0.0, r)
    return 200.0 * jnp.mean(r * mask.astype(jnp.float32))


if __name__ == "__main__":
    key = jax.random.PRNGKey(0)
    insample = jnp.zeros((2, 16), dtype=jnp.float32)  # unused by forward
    freq = 1                                          # unused by forward

    # --- case 1: tiny unaligned shape -> single ragged block, row+col masks,
    #             0/0 -> divide_no_nan path ---
    kf, kt, km = jax.random.split(key, 3)
    B, T = 2, 8
    forecast = jax.random.normal(kf, (B, T), dtype=jnp.float32)
    target = jax.random.normal(kt, (B, T), dtype=jnp.float32)
    mask = (jax.random.uniform(km, (B, T)) > 0.3).astype(jnp.float32)
    forecast = forecast.at[0, 0].set(0.0)
    target = target.at[0, 0].set(0.0)

    ref1 = _smape_ref(forecast, target, mask)
    loss1 = jax.block_until_ready(
        smape_loss(insample, freq, forecast, target, mask, approx=False))
    assert jnp.allclose(loss1, ref1, atol=1e-4, rtol=1e-5), (loss1, ref1)
    loss1a = jax.block_until_ready(
        smape_loss(insample, freq, forecast, target, mask, approx=True))
    assert jnp.allclose(loss1a, ref1, atol=0.5, rtol=5e-3), (loss1a, ref1)

    # --- case 2: unaligned multi-tile grid (2 batch tiles x 3 time tiles),
    #             exercises the VMEM accumulator + edge masks + partials ---
    kf2, kt2, km2 = jax.random.split(jax.random.PRNGKey(1), 3)
    B2, T2 = 10, 300
    f2 = jax.random.normal(kf2, (B2, T2), dtype=jnp.float32)
    t2 = jax.random.normal(kt2, (B2, T2), dtype=jnp.float32)
    m2 = (jax.random.uniform(km2, (B2, T2)) > 0.5).astype(jnp.float32)
    ref2 = _smape_ref(f2, t2, m2)
    loss2 = jax.block_until_ready(
        smape_loss(insample, freq, f2, t2, m2, tile_t=128, approx=False))
    assert jnp.allclose(loss2, ref2, atol=1e-4, rtol=1e-5), (loss2, ref2)
    loss2a = jax.block_until_ready(
        smape_loss(insample, freq, f2, t2, m2, tile_t=128, approx=True))
    assert jnp.allclose(loss2a, ref2, atol=0.5, rtol=5e-3), (loss2a, ref2)

    # --- case 3: fully aligned shape -> no edge masks, nt == 1 fast path,
    #             2 batch tiles for the parallel axis ---
    kf3, kt3, km3 = jax.random.split(jax.random.PRNGKey(2), 3)
    B3, T3 = 16, 256
    f3 = jax.random.normal(kf3, (B3, T3), dtype=jnp.float32)
    t3 = jax.random.normal(kt3, (B3, T3), dtype=jnp.float32)
    m3 = (jax.random.uniform(km3, (B3, T3)) > 0.5).astype(jnp.float32)
    ref3 = _smape_ref(f3, t3, m3)
    loss3 = jax.block_until_ready(smape_loss(insample, freq, f3, t3, m3))
    assert jnp.allclose(loss3, ref3, atol=0.5, rtol=5e-3), (loss3, ref3)

    print("KERNEL_OK")
</pallas_src>

<mosaic_0001>
module attributes {stable_mosaic.version = 11 : i64} {
  func.func @kernel(%arg0: i32, %arg1: i32, %arg2: memref<8x128xf32, #tpu.memory_space<vmem>>, %arg3: memref<8x128xf32, #tpu.memory_space<vmem>>, %arg4: memref<8x128xf32, #tpu.memory_space<vmem>>, %arg5: memref<1x1xf32, #tpu.memory_space<smem>>) attributes {dimension_semantics = [#tpu.dimension_semantics<parallel>, #tpu.dimension_semantics<arbitrary>], iteration_bounds = array<i64: 1, 1>, scalar_prefetch = 0 : i64, scratch_operands = 0 : i64, tpu.core_type = #tpu.core_type<tc>, window_params = [{transform_indices = @transform_0, window_bounds = array<i64: 8, 128>}, {transform_indices = @transform_1, window_bounds = array<i64: 8, 128>}, {transform_indices = @transform_2, window_bounds = array<i64: 8, 128>}, {transform_indices = @transform_3, window_bounds = array<i64: 1, 1>}]} {
    %c0 = arith.constant 0 : index
    %c0_0 = arith.constant 0 : index
    %0 = vector.load %arg2[%c0, %c0_0] : memref<8x128xf32, #tpu.memory_space<vmem>>, vector<8x128xf32>
    %c0_1 = arith.constant 0 : index
    %c0_2 = arith.constant 0 : index
    %1 = vector.load %arg3[%c0_1, %c0_2] : memref<8x128xf32, #tpu.memory_space<vmem>>, vector<8x128xf32>
    %c0_3 = arith.constant 0 : index
    %c0_4 = arith.constant 0 : index
    %2 = vector.load %arg4[%c0_3, %c0_4] : memref<8x128xf32, #tpu.memory_space<vmem>>, vector<8x128xf32>
    %3 = arith.subf %0, %1 : vector<8x128xf32>
    %4 = math.absf %3 : vector<8x128xf32>
    %5 = math.absf %0 : vector<8x128xf32>
    %6 = math.absf %1 : vector<8x128xf32>
    %7 = arith.addf %5, %6 : vector<8x128xf32>
    %8 = arith.divf %4, %7 : vector<8x128xf32>
    %9 = math.absf %8 : vector<8x128xf32>
    %cst = arith.constant 0x7F800000 : f32
    %10 = vector.broadcast %cst : f32 to vector<8x128xf32>
    %11 = arith.cmpf olt, %9, %10 : vector<8x128xf32>
    %cst_5 = arith.constant 0.000000e+00 : f32
    %12 = vector.broadcast %cst_5 : f32 to vector<8x128xf32>
    %13 = arith.select %11, %8, %12 : vector<8x128xi1>, vector<8x128xf32>
    %14 = arith.mulf %13, %2 : vector<8x128xf32>
    %c8_i32 = arith.constant 8 : i32
    %15 = arith.muli %arg0, %c8_i32 : i32
    %16 = tpu.iota {dimensions = array<i32: 0>} : vector<8x128xi32>
    %17 = vector.broadcast %15 : i32 to vector<8x128xi32>
    %18 = arith.addi %17, %16 : vector<8x128xi32>
    %c2_i32 = arith.constant 2 : i32
    %19 = vector.broadcast %c2_i32 : i32 to vector<8x128xi32>
    %20 = arith.cmpi slt, %18, %19 : vector<8x128xi32>
    %c128_i32 = arith.constant 128 : i32
    %21 = arith.muli %arg1, %c128_i32 : i32
    %22 = tpu.iota {dimensions = array<i32: 1>} : vector<8x128xi32>
    %23 = vector.broadcast %21 : i32 to vector<8x128xi32>
    %24 = arith.addi %23, %22 : vector<8x128xi32>
    %c8_i32_6 = arith.constant 8 : i32
    %25 = vector.broadcast %c8_i32_6 : i32 to vector<8x128xi32>
    %26 = arith.cmpi slt, %24, %25 : vector<8x128xi32>
    %27 = arith.andi %20, %26 : vector<8x128xi1>
    %cst_7 = arith.constant 0.000000e+00 : f32
    %28 = vector.broadcast %cst_7 : f32 to vector<8x128xf32>
    %29 = arith.select %27, %14, %28 : vector<8x128xi1>, vector<8x128xf32>
    %30 = vector.shape_cast %29 : vector<8x128xf32> to vector<1x8x128xf32>
    %cst_8 = arith.constant dense<0.000000e+00> : vector<1xf32>
    %31 = vector.multi_reduction <add>, %30, %cst_8 [1, 2] : vector<1x8x128xf32> to vector<1xf32>
    %32 = vector.shape_cast %31 : vector<1xf32> to vector<1x1x1xf32>
    %33 = vector.extract %32[0, 0, 0] : f32 from vector<1x1x1xf32>
    %c0_9 = arith.constant 0 : index
    %c0_10 = arith.constant 0 : index
    %34 = memref.load %arg5[%c0_9, %c0_10] : memref<1x1xf32, #tpu.memory_space<smem>>
    memref.store %33, %arg5[%c0_9, %c0_10] : memref<1x1xf32, #tpu.memory_space<smem>>
    return
  }
  func.func @transform_0(%arg0: i32, %arg1: i32) -> (i32, i32) {
    %c0_i32 = arith.constant 0 : i32
    return %arg0, %arg1 : i32, i32
  }
  func.func @transform_1(%arg0: i32, %arg1: i32) -> (i32, i32) {
    %c0_i32 = arith.constant 0 : i32
    return %arg0, %arg1 : i32, i32
  }
  func.func @transform_2(%arg0: i32, %arg1: i32) -> (i32, i32) {
    %c0_i32 = arith.constant 0 : i32
    return %arg0, %arg1 : i32, i32
  }
  func.func @transform_3(%arg0: i32, %arg1: i32) -> (i32, i32) {
    %c0_i32 = arith.constant 0 : i32
    %c0_i32_0 = arith.constant 0 : i32
    return %arg0, %c0_i32 : i32, i32
  }
}

</mosaic_0001>

<llo_original>
// kernel: tpu_custom_call.1
$region0: #{tpu_custom_call.1}
  #allocation0 [shape = 'u32[]', space=smem, size = 0x4, offset = 0x4, fixed_abs, tag = 'smem constant byte address 0x4 - core index']
  #allocation1 [shape = 'u32[144,128]{1,0:T(1,128)}', space=vmem, size = 0x12000, scoped, tag = 'internal scratch']
  %s0 = inlined_call_operand.hbm [shape: f32[2,8], index: 0, kind: input, shape index: {}]
  %s1 = inlined_call_operand.vmem [shape: f32[2,8], index: 1, kind: input, shape index: {}]
  %s2 = inlined_call_operand.vmem [shape: f32[2,8], index: 2, kind: input, shape index: {}]
  %s3 = inlined_call_operand.hbm [shape: f32[1,1], index: 3, kind: output, shape index: {}]
  %s4 = sld [smem:[#allocation0]]
  $region26: #{tpu_custom_call.1} parent=0
    _
  %s6 = ssub.s32 1, %s4
  %s7 = scalar_select 0, %s6, %s4
  $region1: #{tpu_custom_call.1} parent=0
    #allocation2 [shape = 'u8[4096]{0}', space=vmem, size = 0x1000, scoped, tag = 'input window, operand 0, single buffered']
    #allocation3 [shape = 's32[1]{0}', space=sflag, size = 0x4, scoped, tag = 'scoped memory for tpu_custom_call.1']
    #allocation4 [shape = 's32[1]{0}', space=sflag, size = 0x4, scoped, tag = 'scoped memory for tpu_custom_call.1']
    #allocation5 [shape = 'u8[512]{0}', space=smem, size = 0x200, scoped, tag = 'output window, operand 0, single buffered']
    %8 = vsyncpa [#allocation3], 0
    %9 = vsyncpa [#allocation4], 0
    // Predicated region
    $region2: #{tpu_custom_call.1} parent=1 // pred_check
      _
    $region3: #{tpu_custom_call.1} parent=1 // pred_check_branch
      %11 = sbr.rel (0) target = $region5
    $region4: #{tpu_custom_call.1} parent=1 // pred_region
      %s13 = ssub.s32 128, 32
      %14 = vsyncadd [#allocation3], %s13
      %s15 = sshll.u32 [#allocation2], 4
      %s16 = int_to_ptr.vmem [resolvable:$true] %s15
      %21 = dma.hbm_to_vmem [thread:$0]  %s0, 32, %s16, [#allocation3], 32, 32, 2
    $region5: #{tpu_custom_call.1} parent=1 // pred_fallthru
      _
    // Predicated region
    $region6: #{tpu_custom_call.1} parent=1 // pred_check
      _
    $region7: #{tpu_custom_call.1} parent=1 // pred_check_branch
      %23 = sbr.rel (0) target = $region9
    $region8: #{tpu_custom_call.1} parent=1 // pred_region
      _
    $region9: #{tpu_custom_call.1} parent=1 // pred_fallthru
      _
    // Predicated region
    $region10: #{tpu_custom_call.1} parent=1 // pred_check
      _
    $region11: #{tpu_custom_call.1} parent=1 // pred_check_branch
      %25 = sbr.rel (0) target = $region13
    $region12: #{tpu_custom_call.1} parent=1 // pred_region
      _
    $region13: #{tpu_custom_call.1} parent=1 // pred_fallthru
      _
    // Predicated region
    $region14: #{tpu_custom_call.1} parent=1 // pred_check
      _
    $region15: #{tpu_custom_call.1} parent=1 // pred_check_branch
      %27 = sbr.rel (0) target = $region17
    $region16: #{tpu_custom_call.1} parent=1 // pred_region
      %28 = dma.done [#allocation3], 128
    $region17: #{tpu_custom_call.1} parent=1 // pred_fallthru
      _
    %v29 = vld [vmem:[#allocation2] sm:$0xff]
    %v30 = vld [vmem:[%s1] sm:$0xff]
    %v31 = vld [vmem:[%s2] sm:$0xff]
    %v32 = vsub.f32 %v29, %v30
    %v33 = vand.u32 2147483647, %v32
    %v34 = vand.u32 2147483647, %v29
    %v35 = vand.u32 2147483647, %v30
    %v36 = vadd.f32 %v34, %v35
    %v37 = vrcp.pop %v36
    %v38 = vmul.f32 %v33, %v37
    %v39 = vand.u32 2147483647, %v38
    %vm40 = vcmp.lt.f32.partialorder %v39, inf
    %v41 = vsel %vm40, %v38, 0.0
    %v42 = vmul.f32 %v41, %v31
    %s43 = smul.u32 0, 8
    %v44 = vlaneseq
    %v45 = vshrl.u32 %v44, 7
    %v46 = vstv %s43
    %v47 = vadd.s32 %v46, %v45
    %vm48 = vcmp.lt.s32.totalorder %v47, 2
    %s49 = smul.u32 0, 128
    %v50 = vlaneseq
    %v51 = vand.u32 %v50, 127
    %v52 = vstv %s49
    %v53 = vadd.s32 %v52, %v51
    %vm54 = vcmp.lt.s32.totalorder %v53, 8
    %vm55 = vmand %vm48, %vm54
    %v56 = vsel %vm55, %v42, 0.0
    %57 = vadd.xlane.f32.xlu0 %v56
    %v58 = vpop.xlane.xlu0 %57
    %v59 = vrot.slane %v58, 4
    %v60 = vadd.f32 %v58, %v59
    %v61 = vrot.slane %v60, 2
    %v62 = vadd.f32 %v60, %v61
    %v63 = vrot.slane %v62, 1
    %v64 = vadd.f32 %v62, %v63
    %s65 = vtos %v64
    %s66 = scalar_lea.smem [#allocation5], 0
    %67 = sst [smem:[%s66]] %s65
    // Predicated region
    $region18: #{tpu_custom_call.1} parent=1 // pred_check
      _
    $region19: #{tpu_custom_call.1} parent=1 // pred_check_branch
      %69 = sbr.rel (0) target = $region21
    $region20: #{tpu_custom_call.1} parent=1 // pred_region
      %s71 = ssub.s32 16, 16
      %72 = vsyncadd [#allocation4], %s71
      %75 = dma.smem_to_hbm [#allocation5], 16, %s3, [#allocation4]
    $region21: #{tpu_custom_call.1} parent=1 // pred_fallthru
      _
    // Predicated region
    $region22: #{tpu_custom_call.1} parent=1 // pred_check
      _
    $region23: #{tpu_custom_call.1} parent=1 // pred_check_branch
      %77 = sbr.rel (0) target = $region25
    $region24: #{tpu_custom_call.1} parent=1 // pred_region
      %78 = dma.done [#allocation4], 16
    $region25: #{tpu_custom_call.1} parent=1 // pred_fallthru
      _
    %79 = sfence
    %80 = vsyncpa [#allocation3], 1
    %81 = vsyncpa [#allocation4], 1

</llo_original>
